<compile_context>
chip_gen: v6e
topology: v6e:2x2x1
jax: 0.10.0
libtpu: 0.0.40
codegen_flags: <defaults>
</compile_context>

<pallas_src>
import functools

import jax
import jax.numpy as jnp
from jax.experimental import pallas as pl
from jax.experimental.pallas import tpu as pltpu


def _loss_kernel(logits_ref, tgt_ref, w_ref,
                 tp_ref, sump_ref, cnt_ref, cenum_ref, ceden_ref, *,
                 n_tiles_split, rows, acc_rows, groups,
                 first_partial_tile, total_tiles, p_true):
    """One (split, batch, row-tile) step.

    Kernel-visible shapes (batch / split dims squeezed):
      logits_ref : (C, ROWS, 128)   native dtype  (classes = leading slabs)
      tgt_ref    : (ROWS, 128)      any int/float (cast to int32 here)
      w_ref      : (ROWS, 128)      native dtype
      tp/sump/cnt: (C, ACC_ROWS, 128) f32  lane/sublane-resident accumulators
      cenum/ceden: (ACC_ROWS, 128)    f32
    """
    s = pl.program_id(0)
    i = pl.program_id(2)

    @pl.when(i == 0)
    def _init():
        tp_ref[...] = jnp.zeros_like(tp_ref)
        sump_ref[...] = jnp.zeros_like(sump_ref)
        cnt_ref[...] = jnp.zeros_like(cnt_ref)
        cenum_ref[...] = jnp.zeros_like(cenum_ref)
        ceden_ref[...] = jnp.zeros_like(ceden_ref)

    # Cast to f32 in-kernel (inputs stream in their native dtype).
    logits = logits_ref[...].astype(jnp.float32)      # (C, ROWS, 128)
    tgt = tgt_ref[...].astype(jnp.int32)              # (ROWS, 128)
    w = w_ref[...].astype(jnp.float32)                # (ROWS, 128)
    c = logits.shape[0]

    # Numerically stable softmax / log-softmax along the (leading) class axis:
    # all class reductions are elementwise over C full vreg slabs (VPU only).
    m = jnp.max(logits, axis=0)                       # (ROWS, 128)
    shifted = logits - m[None]
    e = jnp.exp(shifted)
    sum_e = jnp.sum(e, axis=0)                        # (ROWS, 128)
    r = pl.reciprocal(sum_e, approx=True)             # EUP
    inv = r * (2.0 - sum_e * r)                       # one Newton step -> ~exact
    probs = e * inv[None]                             # softmax_helper

    cls = jax.lax.broadcasted_iota(jnp.int32, (c, rows, 128), 0)
    onehot = (cls == tgt[None]).astype(jnp.float32)   # (C, ROWS, 128)

    tp_c = probs * onehot                             # prob at target class
    # CE per pixel (reduction='none'): -log_softmax[target]  (exact form).
    ce = jnp.log(sum_e) - jnp.sum(shifted * onehot, axis=0)   # (ROWS, 128)

    # Fold ROWS sublane-groups down to ACC_ROWS with pure VPU adds so the
    # accumulator read-modify-write touches only 3*C + 2 narrow slabs per step.
    def fold_c(x):                                    # (C, ROWS, 128) -> (C, ACC_ROWS, 128)
        acc = x[:, 0:acc_rows, :]
        for g in range(1, groups):
            acc = acc + x[:, g * acc_rows:(g + 1) * acc_rows, :]
        return acc

    def fold_1(x):                                    # (ROWS, 128) -> (ACC_ROWS, 128)
        acc = x[0:acc_rows, :]
        for g in range(1, groups):
            acc = acc + x[g * acc_rows:(g + 1) * acc_rows, :]
        return acc

    def accumulate(tp_x, probs_x, onehot_x, cew_x, w_x):
        tp_ref[...] += fold_c(tp_x)       # tp
        sump_ref[...] += fold_c(probs_x)  # -> fp = sum(probs) - tp
        cnt_ref[...] += fold_c(onehot_x)  # -> fn = count(target==class) - tp
        cenum_ref[...] += fold_1(cew_x)
        ceden_ref[...] += fold_1(w_x)

    gi = s * n_tiles_split + i            # global (unclamped) row-tile index

    def plain():
        accumulate(tp_c, probs, onehot, ce * w, w)

    def masked():
        # Out-of-range lanes/rows (pixel padding, OOB block tail, phantom
        # split tiles) may carry garbage / NaN; jnp.where sanitises them.
        row_iota = jax.lax.broadcasted_iota(jnp.int32, (rows, 128), 0)
        lane_iota = jax.lax.broadcasted_iota(jnp.int32, (rows, 128), 1)
        pix = (gi * rows + row_iota) * 128 + lane_iota
        valid = pix < p_true
        valid_c = valid[None]
        accumulate(jnp.where(valid_c, tp_c, 0.0),
                   jnp.where(valid_c, probs, 0.0),
                   jnp.where(valid_c, onehot, 0.0),
                   jnp.where(valid, ce * w, 0.0),
                   jnp.where(valid, w, 0.0))

    need_masked = total_tiles > first_partial_tile     # static
    if not need_masked:
        plain()
    elif first_partial_tile == 0:
        masked()
    else:
        # Only the trailing tiles pay for masking; interior tiles stay lean.
        @pl.when(gi < first_partial_tile)
        def _():
            plain()

        @pl.when(gi >= first_partial_tile)
        def _():
            masked()


@functools.partial(jax.jit, static_argnames=("weight_ce", "weight_dice",
                                              "smooth", "do_bg", "eps", "tile_p"))
def dc_and_ce_loss_weighted(net_output, target, weights,
                            weight_ce=1.0, weight_dice=0.1,
                            smooth=1e-5, do_bg=False, eps=1e-8, tile_p=16384):
    b, c = net_output.shape[0], net_output.shape[1]
    p = 1
    for d in net_output.shape[2:]:
        p *= d

    # Keep native dtypes (cast happens in-kernel) and the free NCHW reshape.
    logits = net_output.reshape(b, c, p)
    tgt = target.reshape(b, p)          # target[:, 0] flattened
    w = weights.reshape(b, p)           # weights[:, 0] flattened

    # Lane/sublane-dense layout: pixels on (sublane, lane) = (R, 128), classes
    # as a small leading slab axis.  Free reshape when P % 128 == 0.
    r = (p + 127) // 128
    p_pad = r * 128
    if p_pad != p:
        # TODO(synk): this zero-pad is one extra HBM pass; only taken when the
        #             pixel count is not a multiple of 128 (rare for nnUNet).
        logits = jnp.pad(logits, ((0, 0), (0, 0), (0, p_pad - p)))
        tgt = jnp.pad(tgt, ((0, 0), (0, p_pad - p)))
        w = jnp.pad(w, ((0, 0), (0, p_pad - p)))
    logits = logits.reshape(b, c, r, 128)
    tgt = tgt.reshape(b, r, 128)
    w = w.reshape(b, r, 128)

    # Row-tile size (rows of 128 pixels per grid step).
    tile_rows = max(1, int(tile_p) // 128)
    if r <= tile_rows:
        rows = r                                 # single row-tile covers all rows
    else:
        rows = max(8, (tile_rows // 8) * 8)      # multiple of 8 -> tileable block
    acc_rows = 8 if rows % 8 == 0 else rows
    groups = rows // acc_rows

    n_tiles_real = (r + rows - 1) // rows
    # Pixel-split "parallel" axis so both v7x TensorCores work when B == 1.
    n_split = 2 if (b == 1 and n_tiles_real >= 2) else 1
    n_tiles_split = (n_tiles_real + n_split - 1) // n_split
    total_tiles = n_split * n_tiles_split
    tile_pix = rows * 128
    first_partial_tile = p // tile_pix           # tiles < this are fully in-bounds
    last_blk = n_tiles_real - 1

    def row_blk(s, i):
        # Clamp phantom tiles (uneven split) onto the last real block; their
        # contribution is masked to zero in-kernel.
        return jnp.minimum(s * n_tiles_split + i, last_blk)

    kernel = functools.partial(
        _loss_kernel, n_tiles_split=n_tiles_split, rows=rows, acc_rows=acc_rows,
        groups=groups, first_partial_tile=first_partial_tile,
        total_tiles=total_tiles, p_true=p)

    out_shapes = (
        jax.ShapeDtypeStruct((n_split, b, c, acc_rows, 128), jnp.float32),  # tp
        jax.ShapeDtypeStruct((n_split, b, c, acc_rows, 128), jnp.float32),  # sum(probs)
        jax.ShapeDtypeStruct((n_split, b, c, acc_rows, 128), jnp.float32),  # one-hot count
        jax.ShapeDtypeStruct((n_split, b, acc_rows, 128), jnp.float32),     # sum(ce*w)
        jax.ShapeDtypeStruct((n_split, b, acc_rows, 128), jnp.float32),     # sum(w)
    )

    tp_p, sump_p, cnt_p, cenum_p, ceden_p = pl.pallas_call(
        kernel,
        out_shape=out_shapes,
        grid_spec=pltpu.PrefetchScalarGridSpec(
            num_scalar_prefetch=0,
            grid=(n_split, b, n_tiles_split),
            in_specs=[
                pl.BlockSpec((None, c, rows, 128),
                             lambda s, bi, i: (bi, 0, row_blk(s, i), 0)),
                pl.BlockSpec((None, rows, 128),
                             lambda s, bi, i: (bi, row_blk(s, i), 0)),
                pl.BlockSpec((None, rows, 128),
                             lambda s, bi, i: (bi, row_blk(s, i), 0)),
            ],
            out_specs=[
                pl.BlockSpec((None, None, c, acc_rows, 128),
                             lambda s, bi, i: (s, bi, 0, 0, 0)),
                pl.BlockSpec((None, None, c, acc_rows, 128),
                             lambda s, bi, i: (s, bi, 0, 0, 0)),
                pl.BlockSpec((None, None, c, acc_rows, 128),
                             lambda s, bi, i: (s, bi, 0, 0, 0)),
                pl.BlockSpec((None, None, acc_rows, 128),
                             lambda s, bi, i: (s, bi, 0, 0)),
                pl.BlockSpec((None, None, acc_rows, 128),
                             lambda s, bi, i: (s, bi, 0, 0)),
            ],
        ),
        compiler_params=pltpu.CompilerParams(
            dimension_semantics=("parallel", "parallel", "arbitrary"),
            vmem_limit_bytes=32 * 1024 * 1024,
        ),
    )(logits, tgt, w)

    # Tiny epilogue in plain JAX: reduce partials over split/batch/rows/lanes.
    tp = jnp.sum(tp_p, axis=(0, 1, 3, 4))               # (C,)
    fp = jnp.sum(sump_p, axis=(0, 1, 3, 4)) - tp
    fn = jnp.sum(cnt_p, axis=(0, 1, 3, 4)) - tp

    # SoftDiceLoss (batch_dice=True, square_dice=False)
    nominator = 2.0 * tp + smooth
    denominator = 2.0 * tp + fp + fn + smooth
    dc = nominator / (denominator + 1e-8)
    if not do_bg:
        dc = dc[1:]
    dc_loss = -jnp.mean(dc)

    # weighted CE (ignore_label=None branch)
    ce_loss = jnp.sum(cenum_p) / (jnp.sum(ceden_p) + eps)

    return weight_ce * ce_loss + weight_dice * dc_loss


def _reference_loss(net_output, target, weights,
                    weight_ce=1.0, weight_dice=0.1,
                    smooth=1e-5, do_bg=False, eps=1e-8):
    """Pure-JAX reference of the same forward pass (for verification)."""
    c = net_output.shape[1]
    logits = jnp.moveaxis(net_output, 1, -1).reshape(-1, c).astype(jnp.float32)
    tgt = target[:, 0].reshape(-1).astype(jnp.int32)
    w = weights[:, 0].reshape(-1).astype(jnp.float32)

    probs = jax.nn.softmax(logits, axis=-1)
    onehot = jax.nn.one_hot(tgt, c, dtype=jnp.float32)
    tp = jnp.sum(probs * onehot, axis=0)
    fp = jnp.sum(probs * (1.0 - onehot), axis=0)
    fn = jnp.sum((1.0 - probs) * onehot, axis=0)
    dc = (2.0 * tp + smooth) / (2.0 * tp + fp + fn + smooth + 1e-8)
    if not do_bg:
        dc = dc[1:]
    dc_loss = -jnp.mean(dc)

    logp = jax.nn.log_softmax(logits, axis=-1)
    ce = -jnp.take_along_axis(logp, tgt[:, None], axis=-1)[:, 0]
    ce_loss = jnp.sum(ce * w) / (jnp.sum(w) + eps)
    return weight_ce * ce_loss + weight_dice * dc_loss


if __name__ == "__main__":
    def _run_case(key, b, c, h, w, tile_p):
        k1, k2, k3 = jax.random.split(key, 3)
        net_output = jax.random.normal(k1, (b, c, h, w), dtype=jnp.float32)
        target = jax.random.randint(k2, (b, 1, h, w), 0, c, dtype=jnp.int32)
        weights = jax.random.uniform(k3, (b, 1, h, w), dtype=jnp.float32,
                                     minval=0.1, maxval=2.0)
        loss = jax.block_until_ready(
            dc_and_ce_loss_weighted(net_output, target, weights, tile_p=tile_p))
        ref = _reference_loss(net_output, target, weights)
        assert jnp.allclose(loss, ref, rtol=1e-4, atol=1e-4), (loss, ref)

    keys = jax.random.split(jax.random.PRNGKey(0), 4)
    # 1) P multiple of 128, single row-tile, no masking path.
    _run_case(keys[0], b=2, c=4, h=16, w=16, tile_p=16384)
    # 2) P not a multiple of 128 -> pad + masked (only) tile.
    _run_case(keys[1], b=2, c=4, h=16, w=18, tile_p=16384)
    # 3) B=1 -> dual-TC pixel split, multi-group sublane fold, no masking.
    _run_case(keys[2], b=1, c=3, h=64, w=64, tile_p=2048)
    # 4) B=1, ragged P -> split + phantom tile + partial last-tile masking.
    _run_case(keys[3], b=1, c=4, h=40, w=52, tile_p=1024)

    print("KERNEL_OK")
</pallas_src>

<mosaic_0001>
module attributes {stable_mosaic.version = 11 : i64} {
  func.func @_loss_kernel(%arg0: i32, %arg1: i32, %arg2: i32, %arg3: memref<1x4x2x128xf32, #tpu.memory_space<vmem>>, %arg4: memref<1x2x128xi32, #tpu.memory_space<vmem>>, %arg5: memref<1x2x128xf32, #tpu.memory_space<vmem>>, %arg6: memref<1x1x4x2x128xf32, #tpu.memory_space<vmem>>, %arg7: memref<1x1x4x2x128xf32, #tpu.memory_space<vmem>>, %arg8: memref<1x1x4x2x128xf32, #tpu.memory_space<vmem>>, %arg9: memref<1x1x2x128xf32, #tpu.memory_space<vmem>>, %arg10: memref<1x1x2x128xf32, #tpu.memory_space<vmem>>) attributes {dimension_semantics = [#tpu.dimension_semantics<parallel>, #tpu.dimension_semantics<parallel>, #tpu.dimension_semantics<arbitrary>], iteration_bounds = array<i64: 1, 2, 1>, scalar_prefetch = 0 : i64, scratch_operands = 0 : i64, tpu.core_type = #tpu.core_type<tc>, window_params = [{transform_indices = @transform_0, window_bounds = array<i64: 1, 4, 2, 128>}, {transform_indices = @transform_1, window_bounds = array<i64: 1, 2, 128>}, {transform_indices = @transform_2, window_bounds = array<i64: 1, 2, 128>}, {transform_indices = @transform_3, window_bounds = array<i64: 1, 1, 4, 2, 128>}, {transform_indices = @transform_4, window_bounds = array<i64: 1, 1, 4, 2, 128>}, {transform_indices = @transform_5, window_bounds = array<i64: 1, 1, 4, 2, 128>}, {transform_indices = @transform_6, window_bounds = array<i64: 1, 1, 2, 128>}, {transform_indices = @transform_7, window_bounds = array<i64: 1, 1, 2, 128>}]} {
    %c0_i32 = arith.constant 0 : i32
    %0 = arith.cmpi eq, %arg2, %c0_i32 : i32
    %1 = arith.extui %0 : i1 to i32
    %c0_i32_0 = arith.constant 0 : i32
    %2 = arith.cmpi ne, %1, %c0_i32_0 : i32
    scf.if %2 {
      %cst_59 = arith.constant 0.000000e+00 : f32
      %65 = vector.broadcast %cst_59 : f32 to vector<4x2x128xf32>
      %c0_60 = arith.constant 0 : index
      %c0_61 = arith.constant 0 : index
      %c0_62 = arith.constant 0 : index
      %c0_63 = arith.constant 0 : index
      %c0_64 = arith.constant 0 : index
      %66 = vector.load %arg6[%c0_60, %c0_61, %c0_62, %c0_63, %c0_64] : memref<1x1x4x2x128xf32, #tpu.memory_space<vmem>>, vector<1x1x4x2x128xf32>
      %67 = vector.shape_cast %66 : vector<1x1x4x2x128xf32> to vector<4x2x128xf32>
      %68 = vector.shape_cast %65 : vector<4x2x128xf32> to vector<1x1x4x2x128xf32>
      tpu.vector_store %arg6[%c0_60, %c0_61, %c0_62, %c0_63, %c0_64], %68 {strides = array<i32>} : memref<1x1x4x2x128xf32, #tpu.memory_space<vmem>>, vector<1x1x4x2x128xf32>,
      %cst_65 = arith.constant 0.000000e+00 : f32
      %69 = vector.broadcast %cst_65 : f32 to vector<4x2x128xf32>
      %c0_66 = arith.constant 0 : index
      %c0_67 = arith.constant 0 : index
      %c0_68 = arith.constant 0 : index
      %c0_69 = arith.constant 0 : index
      %c0_70 = arith.constant 0 : index
      %70 = vector.load %arg7[%c0_66, %c0_67, %c0_68, %c0_69, %c0_70] : memref<1x1x4x2x128xf32, #tpu.memory_space<vmem>>, vector<1x1x4x2x128xf32>
      %71 = vector.shape_cast %70 : vector<1x1x4x2x128xf32> to vector<4x2x128xf32>
      %72 = vector.shape_cast %69 : vector<4x2x128xf32> to vector<1x1x4x2x128xf32>
      tpu.vector_store %arg7[%c0_66, %c0_67, %c0_68, %c0_69, %c0_70], %72 {strides = array<i32>} : memref<1x1x4x2x128xf32, #tpu.memory_space<vmem>>, vector<1x1x4x2x128xf32>,
      %cst_71 = arith.constant 0.000000e+00 : f32
      %73 = vector.broadcast %cst_71 : f32 to vector<4x2x128xf32>
      %c0_72 = arith.constant 0 : index
      %c0_73 = arith.constant 0 : index
      %c0_74 = arith.constant 0 : index
      %c0_75 = arith.constant 0 : index
      %c0_76 = arith.constant 0 : index
      %74 = vector.load %arg8[%c0_72, %c0_73, %c0_74, %c0_75, %c0_76] : memref<1x1x4x2x128xf32, #tpu.memory_space<vmem>>, vector<1x1x4x2x128xf32>
      %75 = vector.shape_cast %74 : vector<1x1x4x2x128xf32> to vector<4x2x128xf32>
      %76 = vector.shape_cast %73 : vector<4x2x128xf32> to vector<1x1x4x2x128xf32>
      tpu.vector_store %arg8[%c0_72, %c0_73, %c0_74, %c0_75, %c0_76], %76 {strides = array<i32>} : memref<1x1x4x2x128xf32, #tpu.memory_space<vmem>>, vector<1x1x4x2x128xf32>,
      %cst_77 = arith.constant 0.000000e+00 : f32
      %77 = vector.broadcast %cst_77 : f32 to vector<2x128xf32>
      %c0_78 = arith.constant 0 : index
      %c0_79 = arith.constant 0 : index
      %c0_80 = arith.constant 0 : index
      %c0_81 = arith.constant 0 : index
      %78 = vector.load %arg9[%c0_78, %c0_79, %c0_80, %c0_81] : memref<1x1x2x128xf32, #tpu.memory_space<vmem>>, vector<1x1x2x128xf32>
      %79 = vector.shape_cast %78 : vector<1x1x2x128xf32> to vector<2x128xf32>
      %80 = vector.shape_cast %77 : vector<2x128xf32> to vector<1x1x2x128xf32>
      tpu.vector_store %arg9[%c0_78, %c0_79, %c0_80, %c0_81], %80 {strides = array<i32>} : memref<1x1x2x128xf32, #tpu.memory_space<vmem>>, vector<1x1x2x128xf32>,
      %cst_82 = arith.constant 0.000000e+00 : f32
      %81 = vector.broadcast %cst_82 : f32 to vector<2x128xf32>
      %c0_83 = arith.constant 0 : index
      %c0_84 = arith.constant 0 : index
      %c0_85 = arith.constant 0 : index
      %c0_86 = arith.constant 0 : index
      %82 = vector.load %arg10[%c0_83, %c0_84, %c0_85, %c0_86] : memref<1x1x2x128xf32, #tpu.memory_space<vmem>>, vector<1x1x2x128xf32>
      %83 = vector.shape_cast %82 : vector<1x1x2x128xf32> to vector<2x128xf32>
      %84 = vector.shape_cast %81 : vector<2x128xf32> to vector<1x1x2x128xf32>
      tpu.vector_store %arg10[%c0_83, %c0_84, %c0_85, %c0_86], %84 {strides = array<i32>} : memref<1x1x2x128xf32, #tpu.memory_space<vmem>>, vector<1x1x2x128xf32>,
    } else {
    }
    %c0 = arith.constant 0 : index
    %c0_1 = arith.constant 0 : index
    %c0_2 = arith.constant 0 : index
    %c0_3 = arith.constant 0 : index
    %3 = vector.load %arg3[%c0, %c0_1, %c0_2, %c0_3] : memref<1x4x2x128xf32, #tpu.memory_space<vmem>>, vector<1x4x2x128xf32>
    %4 = vector.shape_cast %3 : vector<1x4x2x128xf32> to vector<4x2x128xf32>
    %c0_4 = arith.constant 0 : index
    %c0_5 = arith.constant 0 : index
    %c0_6 = arith.constant 0 : index
    %5 = vector.load %arg4[%c0_4, %c0_5, %c0_6] : memref<1x2x128xi32, #tpu.memory_space<vmem>>, vector<1x2x128xi32>
    %6 = vector.shape_cast %5 : vector<1x2x128xi32> to vector<2x128xi32>
    %c0_7 = arith.constant 0 : index
    %c0_8 = arith.constant 0 : index
    %c0_9 = arith.constant 0 : index
    %7 = vector.load %arg5[%c0_7, %c0_8, %c0_9] : memref<1x2x128xf32, #tpu.memory_space<vmem>>, vector<1x2x128xf32>
    %8 = vector.shape_cast %7 : vector<1x2x128xf32> to vector<2x128xf32>
    %cst = arith.constant dense<0xFF800000> : vector<2x128xf32>
    %9 = vector.multi_reduction <maximumf>, %4, %cst [0] : vector<4x2x128xf32> to vector<2x128xf32>
    %10 = vector.shape_cast %9 : vector<2x128xf32> to vector<1x2x128xf32>
    %11 = vector.broadcast %10 : vector<1x2x128xf32> to vector<4x2x128xf32>
    %12 = arith.subf %4, %11 : vector<4x2x128xf32>
    %13 = math.exp %12 : vector<4x2x128xf32>
    %cst_10 = arith.constant dense<0.000000e+00> : vector<2x128xf32>
    %14 = vector.multi_reduction <add>, %13, %cst_10 [0] : vector<4x2x128xf32> to vector<2x128xf32>
    %15 = tpu.reciprocal %14 {approx = true} : vector<2x128xf32> -> vector<2x128xf32>
    %16 = arith.mulf %14, %15 : vector<2x128xf32>
    %cst_11 = arith.constant 2.000000e+00 : f32
    %17 = vector.broadcast %cst_11 : f32 to vector<2x128xf32>
    %18 = arith.subf %17, %16 : vector<2x128xf32>
    %19 = arith.mulf %15, %18 : vector<2x128xf32>
    %20 = vector.shape_cast %19 : vector<2x128xf32> to vector<1x2x128xf32>
    %21 = vector.broadcast %20 : vector<1x2x128xf32> to vector<4x2x128xf32>
    %22 = arith.mulf %13, %21 : vector<4x2x128xf32>
    %23 = tpu.iota {dimensions = array<i32: 0>} : vector<4x2x128xi32>
    %24 = vector.shape_cast %6 : vector<2x128xi32> to vector<1x2x128xi32>
    %25 = vector.broadcast %24 : vector<1x2x128xi32> to vector<4x2x128xi32>
    %26 = arith.cmpi eq, %23, %25 : vector<4x2x128xi32>
    %27 = arith.extui %26 : vector<4x2x128xi1> to vector<4x2x128xi32>
    %28 = arith.sitofp %27 : vector<4x2x128xi32> to vector<4x2x128xf32>
    %29 = arith.mulf %22, %28 : vector<4x2x128xf32>
    %30 = math.log %14 : vector<2x128xf32>
    %31 = arith.mulf %12, %28 : vector<4x2x128xf32>
    %cst_12 = arith.constant dense<0.000000e+00> : vector<2x128xf32>
    %32 = vector.multi_reduction <add>, %31, %cst_12 [0] : vector<4x2x128xf32> to vector<2x128xf32>
    %33 = arith.subf %30, %32 : vector<2x128xf32>
    %34 = arith.mulf %33, %8 : vector<2x128xf32>
    %c0_13 = arith.constant 0 : index
    %c0_14 = arith.constant 0 : index
    %c0_15 = arith.constant 0 : index
    %c0_16 = arith.constant 0 : index
    %c0_17 = arith.constant 0 : index
    %35 = vector.load %arg6[%c0_13, %c0_14, %c0_15, %c0_16, %c0_17] : memref<1x1x4x2x128xf32, #tpu.memory_space<vmem>>, vector<1x1x4x2x128xf32>
    %36 = vector.shape_cast %35 : vector<1x1x4x2x128xf32> to vector<4x2x128xf32>
    %37 = arith.addf %36, %29 : vector<4x2x128xf32>
    %c0_18 = arith.constant 0 : index
    %c0_19 = arith.constant 0 : index
    %c0_20 = arith.constant 0 : index
    %c0_21 = arith.constant 0 : index
    %c0_22 = arith.constant 0 : index
    %38 = vector.load %arg6[%c0_18, %c0_19, %c0_20, %c0_21, %c0_22] : memref<1x1x4x2x128xf32, #tpu.memory_space<vmem>>, vector<1x1x4x2x128xf32>
    %39 = vector.shape_cast %38 : vector<1x1x4x2x128xf32> to vector<4x2x128xf32>
    %40 = vector.shape_cast %37 : vector<4x2x128xf32> to vector<1x1x4x2x128xf32>
    tpu.vector_store %arg6[%c0_18, %c0_19, %c0_20, %c0_21, %c0_22], %40 {strides = array<i32>} : memref<1x1x4x2x128xf32, #tpu.memory_space<vmem>>, vector<1x1x4x2x128xf32>,
    %c0_23 = arith.constant 0 : index
    %c0_24 = arith.constant 0 : index
    %c0_25 = arith.constant 0 : index
    %c0_26 = arith.constant 0 : index
    %c0_27 = arith.constant 0 : index
    %41 = vector.load %arg7[%c0_23, %c0_24, %c0_25, %c0_26, %c0_27] : memref<1x1x4x2x128xf32, #tpu.memory_space<vmem>>, vector<1x1x4x2x128xf32>
    %42 = vector.shape_cast %41 : vector<1x1x4x2x128xf32> to vector<4x2x128xf32>
    %43 = arith.addf %42, %22 : vector<4x2x128xf32>
    %c0_28 = arith.constant 0 : index
    %c0_29 = arith.constant 0 : index
    %c0_30 = arith.constant 0 : index
    %c0_31 = arith.constant 0 : index
    %c0_32 = arith.constant 0 : index
    %44 = vector.load %arg7[%c0_28, %c0_29, %c0_30, %c0_31, %c0_32] : memref<1x1x4x2x128xf32, #tpu.memory_space<vmem>>, vector<1x1x4x2x128xf32>
    %45 = vector.shape_cast %44 : vector<1x1x4x2x128xf32> to vector<4x2x128xf32>
    %46 = vector.shape_cast %43 : vector<4x2x128xf32> to vector<1x1x4x2x128xf32>
    tpu.vector_store %arg7[%c0_28, %c0_29, %c0_30, %c0_31, %c0_32], %46 {strides = array<i32>} : memref<1x1x4x2x128xf32, #tpu.memory_space<vmem>>, vector<1x1x4x2x128xf32>,
    %c0_33 = arith.constant 0 : index
    %c0_34 = arith.constant 0 : index
    %c0_35 = arith.constant 0 : index
    %c0_36 = arith.constant 0 : index
    %c0_37 = arith.constant 0 : index
    %47 = vector.load %arg8[%c0_33, %c0_34, %c0_35, %c0_36, %c0_37] : memref<1x1x4x2x128xf32, #tpu.memory_space<vmem>>, vector<1x1x4x2x128xf32>
    %48 = vector.shape_cast %47 : vector<1x1x4x2x128xf32> to vector<4x2x128xf32>
    %49 = arith.addf %48, %28 : vector<4x2x128xf32>
    %c0_38 = arith.constant 0 : index
    %c0_39 = arith.constant 0 : index
    %c0_40 = arith.constant 0 : index
    %c0_41 = arith.constant 0 : index
    %c0_42 = arith.constant 0 : index
    %50 = vector.load %arg8[%c0_38, %c0_39, %c0_40, %c0_41, %c0_42] : memref<1x1x4x2x128xf32, #tpu.memory_space<vmem>>, vector<1x1x4x2x128xf32>
    %51 = vector.shape_cast %50 : vector<1x1x4x2x128xf32> to vector<4x2x128xf32>
    %52 = vector.shape_cast %49 : vector<4x2x128xf32> to vector<1x1x4x2x128xf32>
    tpu.vector_store %arg8[%c0_38, %c0_39, %c0_40, %c0_41, %c0_42], %52 {strides = array<i32>} : memref<1x1x4x2x128xf32, #tpu.memory_space<vmem>>, vector<1x1x4x2x128xf32>,
    %c0_43 = arith.constant 0 : index
    %c0_44 = arith.constant 0 : index
    %c0_45 = arith.constant 0 : index
    %c0_46 = arith.constant 0 : index
    %53 = vector.load %arg9[%c0_43, %c0_44, %c0_45, %c0_46] : memref<1x1x2x128xf32, #tpu.memory_space<vmem>>, vector<1x1x2x128xf32>
    %54 = vector.shape_cast %53 : vector<1x1x2x128xf32> to vector<2x128xf32>
    %55 = arith.addf %54, %34 : vector<2x128xf32>
    %c0_47 = arith.constant 0 : index
    %c0_48 = arith.constant 0 : index
    %c0_49 = arith.constant 0 : index
    %c0_50 = arith.constant 0 : index
    %56 = vector.load %arg9[%c0_47, %c0_48, %c0_49, %c0_50] : memref<1x1x2x128xf32, #tpu.memory_space<vmem>>, vector<1x1x2x128xf32>
    %57 = vector.shape_cast %56 : vector<1x1x2x128xf32> to vector<2x128xf32>
    %58 = vector.shape_cast %55 : vector<2x128xf32> to vector<1x1x2x128xf32>
    tpu.vector_store %arg9[%c0_47, %c0_48, %c0_49, %c0_50], %58 {strides = array<i32>} : memref<1x1x2x128xf32, #tpu.memory_space<vmem>>, vector<1x1x2x128xf32>,
    %c0_51 = arith.constant 0 : index
    %c0_52 = arith.constant 0 : index
    %c0_53 = arith.constant 0 : index
    %c0_54 = arith.constant 0 : index
    %59 = vector.load %arg10[%c0_51, %c0_52, %c0_53, %c0_54] : memref<1x1x2x128xf32, #tpu.memory_space<vmem>>, vector<1x1x2x128xf32>
    %60 = vector.shape_cast %59 : vector<1x1x2x128xf32> to vector<2x128xf32>
    %61 = arith.addf %60, %8 : vector<2x128xf32>
    %c0_55 = arith.constant 0 : index
    %c0_56 = arith.constant 0 : index
    %c0_57 = arith.constant 0 : index
    %c0_58 = arith.constant 0 : index
    %62 = vector.load %arg10[%c0_55, %c0_56, %c0_57, %c0_58] : memref<1x1x2x128xf32, #tpu.memory_space<vmem>>, vector<1x1x2x128xf32>
    %63 = vector.shape_cast %62 : vector<1x1x2x128xf32> to vector<2x128xf32>
    %64 = vector.shape_cast %61 : vector<2x128xf32> to vector<1x1x2x128xf32>
    tpu.vector_store %arg10[%c0_55, %c0_56, %c0_57, %c0_58], %64 {strides = array<i32>} : memref<1x1x2x128xf32, #tpu.memory_space<vmem>>, vector<1x1x2x128xf32>,
    return
  }
  func.func @transform_0(%arg0: i32, %arg1: i32, %arg2: i32) -> (i32, i32, i32, i32) {
    %c1_i32 = arith.constant 1 : i32
    %0 = arith.muli %arg0, %c1_i32 : i32
    %1 = arith.addi %0, %arg2 : i32
    %c0_i32 = arith.constant 0 : i32
    %2 = arith.minsi %1, %c0_i32 : i32
    %c0_i32_0 = arith.constant 0 : i32
    %c0_i32_1 = arith.constant 0 : i32
    %c0_i32_2 = arith.constant 0 : i32
    return %arg1, %c0_i32_0, %2, %c0_i32_1 : i32, i32, i32, i32
  }
  func.func @transform_1(%arg0: i32, %arg1: i32, %arg2: i32) -> (i32, i32, i32) {
    %c1_i32 = arith.constant 1 : i32
    %0 = arith.muli %arg0, %c1_i32 : i32
    %1 = arith.addi %0, %arg2 : i32
    %c0_i32 = arith.constant 0 : i32
    %2 = arith.minsi %1, %c0_i32 : i32
    %c0_i32_0 = arith.constant 0 : i32
    %c0_i32_1 = arith.constant 0 : i32
    return %arg1, %2, %c0_i32_0 : i32, i32, i32
  }
  func.func @transform_2(%arg0: i32, %arg1: i32, %arg2: i32) -> (i32, i32, i32) {
    %c1_i32 = arith.constant 1 : i32
    %0 = arith.muli %arg0, %c1_i32 : i32
    %1 = arith.addi %0, %arg2 : i32
    %c0_i32 = arith.constant 0 : i32
    %2 = arith.minsi %1, %c0_i32 : i32
    %c0_i32_0 = arith.constant 0 : i32
    %c0_i32_1 = arith.constant 0 : i32
    return %arg1, %2, %c0_i32_0 : i32, i32, i32
  }
  func.func @transform_3(%arg0: i32, %arg1: i32, %arg2: i32) -> (i32, i32, i32, i32, i32) {
    %c0_i32 = arith.constant 0 : i32
    %c0_i32_0 = arith.constant 0 : i32
    %c0_i32_1 = arith.constant 0 : i32
    %c0_i32_2 = arith.constant 0 : i32
    return %arg0, %arg1, %c0_i32, %c0_i32_0, %c0_i32_1 : i32, i32, i32, i32, i32
  }
  func.func @transform_4(%arg0: i32, %arg1: i32, %arg2: i32) -> (i32, i32, i32, i32, i32) {
    %c0_i32 = arith.constant 0 : i32
    %c0_i32_0 = arith.constant 0 : i32
    %c0_i32_1 = arith.constant 0 : i32
    %c0_i32_2 = arith.constant 0 : i32
    return %arg0, %arg1, %c0_i32, %c0_i32_0, %c0_i32_1 : i32, i32, i32, i32, i32
  }
  func.func @transform_5(%arg0: i32, %arg1: i32, %arg2: i32) -> (i32, i32, i32, i32, i32) {
    %c0_i32 = arith.constant 0 : i32
    %c0_i32_0 = arith.constant 0 : i32
    %c0_i32_1 = arith.constant 0 : i32
    %c0_i32_2 = arith.constant 0 : i32
    return %arg0, %arg1, %c0_i32, %c0_i32_0, %c0_i32_1 : i32, i32, i32, i32, i32
  }
  func.func @transform_6(%arg0: i32, %arg1: i32, %arg2: i32) -> (i32, i32, i32, i32) {
    %c0_i32 = arith.constant 0 : i32
    %c0_i32_0 = arith.constant 0 : i32
    %c0_i32_1 = arith.constant 0 : i32
    return %arg0, %arg1, %c0_i32, %c0_i32_0 : i32, i32, i32, i32
  }
  func.func @transform_7(%arg0: i32, %arg1: i32, %arg2: i32) -> (i32, i32, i32, i32) {
    %c0_i32 = arith.constant 0 : i32
    %c0_i32_0 = arith.constant 0 : i32
    %c0_i32_1 = arith.constant 0 : i32
    return %arg0, %arg1, %c0_i32, %c0_i32_0 : i32, i32, i32, i32
  }
}

</mosaic_0001>

<llo_original>
// kernel: dc_and_ce_loss_weighted.1
$region0: #{dc_and_ce_loss_weighted.1}
  #allocation0 [shape = 'u32[]', space=smem, size = 0x4, offset = 0x4, fixed_abs, tag = 'smem constant byte address 0x4 - core index']
  #allocation1 [shape = 'u32[144,128]{1,0:T(1,128)}', space=vmem, size = 0x12000, scoped, tag = 'internal scratch']
  %s0 = inlined_call_operand.vmem [shape: f32[2,4,2,128], index: 0, kind: input, shape index: {}]
  %s1 = inlined_call_operand.vmem [shape: s32[2,2,128], index: 1, kind: input, shape index: {}]
  %s2 = inlined_call_operand.vmem [shape: f32[2,2,128], index: 2, kind: input, shape index: {}]
  %s3 = inlined_call_operand.vmem [shape: f32[1,2,4,2,128], index: 3, kind: output, shape index: {0}]
  %s4 = inlined_call_operand.vmem [shape: f32[1,2,4,2,128], index: 4, kind: output, shape index: {1}]
  %s5 = inlined_call_operand.vmem [shape: f32[1,2,4,2,128], index: 5, kind: output, shape index: {2}]
  %s6 = inlined_call_operand.vmem [shape: f32[1,2,2,128], index: 6, kind: output, shape index: {3}]
  %s7 = inlined_call_operand.vmem [shape: f32[1,2,2,128], index: 7, kind: output, shape index: {4}]
  %8 = xla_tuple %s3, %s4, %s5, %s6, %s7
  %s9 = sld [smem:[#allocation0]]
  $region81: #{dc_and_ce_loss_weighted.1} parent=0
    _
  %s11 = ssub.s32 1, %s9
  %s12 = scalar_select 0, %s11, %s9
  loop: start=0, step=1, limit=4
  $region2: #{dc_and_ce_loss_weighted.1} parent=0 // loop_pre_header
    _
  $region3: #{dc_and_ce_loss_weighted.1} parent=0 // loop_header
    %s14 = sphi 0, %s18
    %p15 = scmp.ge.s32.totalorder %s14, 4
    %s21 = sphi 0, %s40
    %s22 = sphi 0, %s36
    %s23 = sphi 0, %s32
    %s24 = sphi 0, %s21
    %s25 = sphi 0, %s22
    %s26 = sphi 0, %s23
    %s27 = sphi 0, %s24
    %s28 = sphi 0, %s25
    %s29 = sphi 0, %s26
    %s51 = sphi 0, %s53
    %s54 = sphi 0, %s51
    %s55 = sphi 0, %s54
    %s71 = sphi 0, %s55
    %s85 = sphi 0, %s87
    %s88 = sphi 0, %s85
    %s89 = sphi 0, %s88
    %s105 = sphi 0, %s89
    %s119 = sphi 0, %s121
    %s122 = sphi 0, %s119
    %s123 = sphi 0, %s122
    %s139 = sphi 0, %s123
    %s147 = sphi 0, %s149
    %s150 = sphi 0, %s147
    %s151 = sphi 0, %s150
    %s167 = sphi 0, %s151
    %s175 = sphi 0, %s177
    %s178 = sphi 0, %s175
    %s179 = sphi 0, %s178
    %s195 = sphi 0, %s179
    %s203 = sphi 0, %s205
    %s206 = sphi 0, %s203
    %s207 = sphi 0, %s206
    %s223 = sphi 0, %s207
    %s231 = sphi 0, %s233
    %s234 = sphi 0, %s231
    %s235 = sphi 0, %s234
    %s251 = sphi 0, %s235
    %s259 = sphi 0, %s261
    %s262 = sphi 0, %s259
    %s263 = sphi 0, %s262
    %s279 = sphi 0, %s263
  $region4: #{dc_and_ce_loss_weighted.1} parent=0 // loop_header_branch
    %17 = sbr.rel (%p15) target = $region8
  $region5: #{dc_and_ce_loss_weighted.1} parent=0 // loop_body
    %s19 = ssub.s32 %s14, 1
    %s20 = ssub.s32 %s14, 2
    %s30 = sadd.s32 1, %s23
    %p31 = scmp.ge.s32.totalorder %s30, 1
    %s32 = scalar_select %p31, 0, %s30
    %s33 = sadd.s32 1, %s22
    %s34 = scalar_select %p31, %s33, %s22
    %p35 = scmp.ge.s32.totalorder %s34, 2
    %s36 = scalar_select %p35, 0, %s34
    %s37 = sadd.s32 1, %s21
    %s38 = scalar_select %p35, %s37, %s21
    %p39 = scmp.ge.s32.totalorder %s38, 1
    %s40 = scalar_select %p39, 0, %s38
    %s41 = sadd.s32 %s21, %s23
    %p42 = scmp.lt.s32.totalorder %s41, 0
    %s43 = scalar_select %p42, %s41, 0
    %s44 = sadd.s32 %s40, %s32
    %p45 = scmp.lt.s32.totalorder %s44, 0
    %s46 = scalar_select %p45, %s44, 0
    %s47 = ssub.s32 %s22, %s36
    %s48 = ssub.s32 %s43, %s46
    %s49 = sor.u32 %s47, %s48
    %p50 = scmp.eq.s32.totalorder %s49, 0
    %s52 = sadd.s32 %s51, 1
    %s53 = scalar_select %p50, %s51, %s52
    %p56 = pneg %p50
    %p57 = scmp.eq.s32.totalorder %s14, 1
    %p58 = por %p56, %p57
    %p59 = scmp.ne.s32.totalorder %s51, %s54
    %p60 = scmp.eq.s32.totalorder %s14, 0
    %p61 = por %p59, %p60
    %p62 = scmp.ne.s32.totalorder %s51, %s54
    %p63 = scmp.eq.s32.totalorder %s19, 1
    %p64 = por %p62, %p63
    %p65 = scmp.ne.s32.totalorder %s54, %s55
    %p66 = scmp.eq.s32.totalorder %s19, 0
    %p67 = por %p65, %p66
    %p68 = scmp.ne.s32.totalorder %s54, %s55
    %p69 = scmp.eq.s32.totalorder %s20, 1
    %p70 = por %p68, %p69
    %p72 = scmp.ne.s32.totalorder %s55, %s71
    %p73 = scmp.eq.s32.totalorder %s20, 0
    %p74 = por %p72, %p73
    %s75 = sadd.s32 %s21, %s23
    %p76 = scmp.lt.s32.totalorder %s75, 0
    %s77 = scalar_select %p76, %s75, 0
    %s78 = sadd.s32 %s40, %s32
    %p79 = scmp.lt.s32.totalorder %s78, 0
    %s80 = scalar_select %p79, %s78, 0
    %s81 = ssub.s32 %s22, %s36
    %s82 = ssub.s32 %s77, %s80
    %s83 = sor.u32 %s81, %s82
    %p84 = scmp.eq.s32.totalorder %s83, 0
    %s86 = sadd.s32 %s85, 1
    %s87 = scalar_select %p84, %s85, %s86
    %p90 = pneg %p84
    %p91 = scmp.eq.s32.totalorder %s14, 1
    %p92 = por %p90, %p91
    %p93 = scmp.ne.s32.totalorder %s85, %s88
    %p94 = scmp.eq.s32.totalorder %s14, 0
    %p95 = por %p93, %p94
    %p96 = scmp.ne.s32.totalorder %s85, %s88
    %p97 = scmp.eq.s32.totalorder %s19, 1
    %p98 = por %p96, %p97
    %p99 = scmp.ne.s32.totalorder %s88, %s89
    %p100 = scmp.eq.s32.totalorder %s19, 0
    %p101 = por %p99, %p100
    %p102 = scmp.ne.s32.totalorder %s88, %s89
    %p103 = scmp.eq.s32.totalorder %s20, 1
    %p104 = por %p102, %p103
    %p106 = scmp.ne.s32.totalorder %s89, %s105
    %p107 = scmp.eq.s32.totalorder %s20, 0
    %p108 = por %p106, %p107
    %s109 = sadd.s32 %s21, %s23
    %p110 = scmp.lt.s32.totalorder %s109, 0
    %s111 = scalar_select %p110, %s109, 0
    %s112 = sadd.s32 %s40, %s32
    %p113 = scmp.lt.s32.totalorder %s112, 0
    %s114 = scalar_select %p113, %s112, 0
    %s115 = ssub.s32 %s22, %s36
    %s116 = ssub.s32 %s111, %s114
    %s117 = sor.u32 %s115, %s116
    %p118 = scmp.eq.s32.totalorder %s117, 0
    %s120 = sadd.s32 %s119, 1
    %s121 = scalar_select %p118, %s119, %s120
    %p124 = pneg %p118
    %p125 = scmp.eq.s32.totalorder %s14, 1
    %p126 = por %p124, %p125
    %p127 = scmp.ne.s32.totalorder %s119, %s122
    %p128 = scmp.eq.s32.totalorder %s14, 0
    %p129 = por %p127, %p128
    %p130 = scmp.ne.s32.totalorder %s119, %s122
    %p131 = scmp.eq.s32.totalorder %s19, 1
    %p132 = por %p130, %p131
    %p133 = scmp.ne.s32.totalorder %s122, %s123
    %p134 = scmp.eq.s32.totalorder %s19, 0
    %p135 = por %p133, %p134
    %p136 = scmp.ne.s32.totalorder %s122, %s123
    %p137 = scmp.eq.s32.totalorder %s20, 1
    %p138 = por %p136, %p137
    %p140 = scmp.ne.s32.totalorder %s123, %s139
    %p141 = scmp.eq.s32.totalorder %s20, 0
    %p142 = por %p140, %p141
    %s143 = ssub.s32 %s21, %s40
    %s144 = ssub.s32 %s22, %s36
    %s145 = sor.u32 %s143, %s144
    %p146 = scmp.eq.s32.totalorder %s145, 0
    %s148 = sadd.s32 %s147, 1
    %s149 = scalar_select %p146, %s147, %s148
    %p152 = pneg %p146
    %p153 = scmp.eq.s32.totalorder %s14, 1
    %p154 = por %p152, %p153
    %p155 = scmp.ne.s32.totalorder %s147, %s150
    %p156 = scmp.eq.s32.totalorder %s14, 0
    %p157 = por %p155, %p156
    %p158 = scmp.ne.s32.totalorder %s147, %s150
    %p159 = scmp.eq.s32.totalorder %s19, 1
    %p160 = por %p158, %p159
    %p161 = scmp.ne.s32.totalorder %s150, %s151
    %p162 = scmp.eq.s32.totalorder %s19, 0
    %p163 = por %p161, %p162
    %p164 = scmp.ne.s32.totalorder %s150, %s151
    %p165 = scmp.eq.s32.totalorder %s20, 1
    %p166 = por %p164, %p165
    %p168 = scmp.ne.s32.totalorder %s151, %s167
    %p169 = scmp.eq.s32.totalorder %s20, 0
    %p170 = por %p168, %p169
    %s171 = ssub.s32 %s21, %s40
    %s172 = ssub.s32 %s22, %s36
    %s173 = sor.u32 %s171, %s172
    %p174 = scmp.eq.s32.totalorder %s173, 0
    %s176 = sadd.s32 %s175, 1
    %s177 = scalar_select %p174, %s175, %s176
    %p180 = pneg %p174
    %p181 = scmp.eq.s32.totalorder %s14, 1
    %p182 = por %p180, %p181
    %p183 = scmp.ne.s32.totalorder %s175, %s178
    %p184 = scmp.eq.s32.totalorder %s14, 0
    %p185 = por %p183, %p184
    %p186 = scmp.ne.s32.totalorder %s175, %s178
    %p187 = scmp.eq.s32.totalorder %s19, 1
    %p188 = por %p186, %p187
    %p189 = scmp.ne.s32.totalorder %s178, %s179
    %p190 = scmp.eq.s32.totalorder %s19, 0
    %p191 = por %p189, %p190
    %p192 = scmp.ne.s32.totalorder %s178, %s179
    %p193 = scmp.eq.s32.totalorder %s20, 1
    %p194 = por %p192, %p193
    %p196 = scmp.ne.s32.totalorder %s179, %s195
    %p197 = scmp.eq.s32.totalorder %s20, 0
    %p198 = por %p196, %p197
    %s199 = ssub.s32 %s21, %s40
    %s200 = ssub.s32 %s22, %s36
    %s201 = sor.u32 %s199, %s200
    %p202 = scmp.eq.s32.totalorder %s201, 0
    %s204 = sadd.s32 %s203, 1
    %s205 = scalar_select %p202, %s203, %s204
    %p208 = pneg %p202
    %p209 = scmp.eq.s32.totalorder %s14, 1
    %p210 = por %p208, %p209
    %p211 = scmp.ne.s32.totalorder %s203, %s206
    %p212 = scmp.eq.s32.totalorder %s14, 0
    %p213 = por %p211, %p212
    %p214 = scmp.ne.s32.totalorder %s203, %s206
    %p215 = scmp.eq.s32.totalorder %s19, 1
    %p216 = por %p214, %p215
    %p217 = scmp.ne.s32.totalorder %s206, %s207
    %p218 = scmp.eq.s32.totalorder %s19, 0
    %p219 = por %p217, %p218
    %p220 = scmp.ne.s32.totalorder %s206, %s207
    %p221 = scmp.eq.s32.totalorder %s20, 1
    %p222 = por %p220, %p221
    %p224 = scmp.ne.s32.totalorder %s207, %s223
    %p225 = scmp.eq.s32.totalorder %s20, 0
    %p226 = por %p224, %p225
    %s227 = ssub.s32 %s21, %s40
    %s228 = ssub.s32 %s22, %s36
    %s229 = sor.u32 %s227, %s228
    %p230 = scmp.eq.s32.totalorder %s229, 0
    %s232 = sadd.s32 %s231, 1
    %s233 = scalar_select %p230, %s231, %s232
    %p236 = pneg %p230
    %p237 = scmp.eq.s32.totalorder %s14, 1
    %p238 = por %p236, %p237
    %p239 = scmp.ne.s32.totalorder %s231, %s234
    %p240 = scmp.eq.s32.totalorder %s14, 0
    %p241 = por %p239, %p240
    %p242 = scmp.ne.s32.totalorder %s231, %s234
    %p243 = scmp.eq.s32.totalorder %s19, 1
    %p244 = por %p242, %p243
    %p245 = scmp.ne.s32.totalorder %s234, %s235
    %p246 = scmp.eq.s32.totalorder %s19, 0
    %p247 = por %p245, %p246
    %p248 = scmp.ne.s32.totalorder %s234, %s235
    %p249 = scmp.eq.s32.totalorder %s20, 1
    %p250 = por %p248, %p249
    %p252 = scmp.ne.s32.totalorder %s235, %s251
    %p253 = scmp.eq.s32.totalorder %s20, 0
    %p254 = por %p252, %p253
    %s255 = ssub.s32 %s21, %s40
    %s256 = ssub.s32 %s22, %s36
    %s257 = sor.u32 %s255, %s256
    %p258 = scmp.eq.s32.totalorder %s257, 0
    %s260 = sadd.s32 %s259, 1
    %s261 = scalar_select %p258, %s259, %s260
    %p264 = pneg %p258
    %p265 = scmp.eq.s32.totalorder %s14, 1
    %p266 = por %p264, %p265
    %p267 = scmp.ne.s32.totalorder %s259, %s262
    %p268 = scmp.eq.s32.totalorder %s14, 0
    %p269 = por %p267, %p268
    %p270 = scmp.ne.s32.totalorder %s259, %s262
    %p271 = scmp.eq.s32.totalorder %s19, 1
    %p272 = por %p270, %p271
    %p273 = scmp.ne.s32.totalorder %s262, %s263
    %p274 = scmp.eq.s32.totalorder %s19, 0
    %p275 = por %p273, %p274
    %p276 = scmp.ne.s32.totalorder %s262, %s263
    %p277 = scmp.eq.s32.totalorder %s20, 1
    %p278 = por %p276, %p277
    %p280 = scmp.ne.s32.totalorder %s263, %s279
    %p281 = scmp.eq.s32.totalorder %s20, 0
    %p282 = por %p280, %p281
    %p283 = scmp.le.s32.totalorder 1, %s14
    %p284 = scmp.lt.s32.totalorder %s14, 3
    %p285 = pnand %p283, %p284
    %p286 = pneg %p285
    // Predicated region
    $region9: #{dc_and_ce_loss_weighted.1} parent=5 // pred_check
      _
    $region10: #{dc_and_ce_loss_weighted.1} parent=5 // pred_check_branch
      %288 = sbr.rel (%p285) target = $region12
    $region11: #{dc_and_ce_loss_weighted.1} parent=5 // pred_region
      %s289 = ssub.s32 %s14, 1
    $region12: #{dc_and_ce_loss_weighted.1} parent=5 // pred_fallthru
      _
    %p290 = scmp.lt.s32.totalorder %s14, 2
    // Predicated region
    $region13: #{dc_and_ce_loss_weighted.1} parent=5 // pred_check
      %p291 = pneg %p290
    $region14: #{dc_and_ce_loss_weighted.1} parent=5 // pred_check_branch
      %293 = sbr.rel (%p291) target = $region16
    $region15: #{dc_and_ce_loss_weighted.1} parent=5 // pred_region
      // Predicated region
      $region17: #{dc_and_ce_loss_weighted.1} parent=15 // pred_check
        %p294 = pneg %p61
      $region18: #{dc_and_ce_loss_weighted.1} parent=15 // pred_check_branch
        %296 = sbr.rel (%p294) target = $region20
      $region19: #{dc_and_ce_loss_weighted.1} parent=15 // pred_region
        %s297 = sadd.s32 %s21, %s23
        %p298 = scmp.lt.s32.totalorder %s297, 0
        %s299 = scalar_select %p298, %s297, 0
        %p300 = scmp.lt.s32.totalorder %s22, 1
        %s301 = scalar_select %p300, %s22, 1
        %p302 = scmp.lt.s32.totalorder %s299, 0
        %s303 = scalar_select %p302, %s299, 0
        %s304 = smul.addr %s301, 4
        %s305 = sadd.s32 %s303, %s304
        %s306 = smul.addr %s305, 2
        %s307 = scalar_lea.vmem %s0, %s306
        %s308 = sadd.s32 %s21, %s23
        %p309 = scmp.lt.s32.totalorder %s308, 0
        %s310 = scalar_select %p309, %s308, 0
      $region20: #{dc_and_ce_loss_weighted.1} parent=15 // pred_fallthru
        _
      // Predicated region
      $region21: #{dc_and_ce_loss_weighted.1} parent=15 // pred_check
        %p311 = pneg %p95
      $region22: #{dc_and_ce_loss_weighted.1} parent=15 // pred_check_branch
        %313 = sbr.rel (%p311) target = $region24
      $region23: #{dc_and_ce_loss_weighted.1} parent=15 // pred_region
        %s314 = sadd.s32 %s21, %s23
        %p315 = scmp.lt.s32.totalorder %s314, 0
        %s316 = scalar_select %p315, %s314, 0
        %p317 = scmp.lt.s32.totalorder %s22, 1
        %s318 = scalar_select %p317, %s22, 1
        %p319 = scmp.lt.s32.totalorder %s316, 0
        %s320 = scalar_select %p319, %s316, 0
        %s321 = sadd.s32 %s320, %s318
        %s322 = smul.addr %s321, 2
        %s323 = scalar_lea.vmem %s1, %s322
        %s324 = sadd.s32 %s21, %s23
        %p325 = scmp.lt.s32.totalorder %s324, 0
        %s326 = scalar_select %p325, %s324, 0
      $region24: #{dc_and_ce_loss_weighted.1} parent=15 // pred_fallthru
        _
      // Predicated region
      $region25: #{dc_and_ce_loss_weighted.1} parent=15 // pred_check
        %p327 = pneg %p129
      $region26: #{dc_and_ce_loss_weighted.1} parent=15 // pred_check_branch
        %329 = sbr.rel (%p327) target = $region28
      $region27: #{dc_and_ce_loss_weighted.1} parent=15 // pred_region
        %s330 = sadd.s32 %s21, %s23
        %p331 = scmp.lt.s32.totalorder %s330, 0
        %s332 = scalar_select %p331, %s330, 0
        %p333 = scmp.lt.s32.totalorder %s22, 1
        %s334 = scalar_select %p333, %s22, 1
        %p335 = scmp.lt.s32.totalorder %s332, 0
        %s336 = scalar_select %p335, %s332, 0
        %s337 = sadd.s32 %s336, %s334
        %s338 = smul.addr %s337, 2
        %s339 = scalar_lea.vmem %s2, %s338
        %s340 = sadd.s32 %s21, %s23
        %p341 = scmp.lt.s32.totalorder %s340, 0
        %s342 = scalar_select %p341, %s340, 0
      $region28: #{dc_and_ce_loss_weighted.1} parent=15 // pred_fallthru
        _
    $region16: #{dc_and_ce_loss_weighted.1} parent=5 // pred_fallthru
      _
    %p343 = scmp.le.s32.totalorder 1, %s14
    %p344 = scmp.lt.s32.totalorder %s14, 3
    %p345 = pnand %p343, %p344
    %p346 = pneg %p345
    // Predicated region
    $region29: #{dc_and_ce_loss_weighted.1} parent=5 // pred_check
      _
    $region30: #{dc_and_ce_loss_weighted.1} parent=5 // pred_check_branch
      %348 = sbr.rel (%p345) target = $region32
    $region31: #{dc_and_ce_loss_weighted.1} parent=5 // pred_region
      %s349 = ssub.s32 %s14, 1
      %s350 = sadd.s32 %s24, %s26
      %p351 = scmp.lt.s32.totalorder %s350, 0
      %s352 = scalar_select %p351, %s350, 0
      %p353 = scmp.lt.s32.totalorder %s25, 1
      %s354 = scalar_select %p353, %s25, 1
      %p355 = scmp.lt.s32.totalorder %s352, 0
      %s356 = scalar_select %p355, %s352, 0
      %s357 = smul.addr %s354, 4
      %s358 = sadd.s32 %s356, %s357
      %s359 = smul.addr %s358, 2
      %s360 = scalar_lea.vmem %s0, %s359
      %p361 = pneg %p67
      %p362 = pneg %p64
      %s363 = sadd.s32 %s24, %s26
      %p364 = scmp.lt.s32.totalorder %s363, 0
      %s365 = scalar_select %p364, %s363, 0
      %p366 = scmp.lt.s32.totalorder %s25, 1
      %s367 = scalar_select %p366, %s25, 1
      %p368 = scmp.lt.s32.totalorder %s365, 0
      %s369 = scalar_select %p368, %s365, 0
      %s370 = sadd.s32 %s369, %s367
      %s371 = smul.addr %s370, 2
      %s372 = scalar_lea.vmem %s1, %s371
      %p373 = pneg %p101
      %p374 = pneg %p98
      %s375 = sadd.s32 %s24, %s26
      %p376 = scmp.lt.s32.totalorder %s375, 0
      %s377 = scalar_select %p376, %s375, 0
      %p378 = scmp.lt.s32.totalorder %s25, 1
      %s379 = scalar_select %p378, %s25, 1
      %p380 = scmp.lt.s32.totalorder %s377, 0
      %s381 = scalar_select %p380, %s377, 0
      %s382 = sadd.s32 %s381, %s379
      %s383 = smul.addr %s382, 2
      %s384 = scalar_lea.vmem %s2, %s383
      %p385 = pneg %p135
      %p386 = pneg %p132
      %p387 = pneg %p163
      %p388 = pneg %p160
      %p389 = scmp.lt.s32.totalorder %s24, 0
      %s390 = scalar_select %p389, %s24, 0
      %p391 = scmp.lt.s32.totalorder %s25, 1
      %s392 = scalar_select %p391, %s25, 1
      %s393 = smul.addr %s392, 4
      %s394 = smul.addr %s390, 8
      %s395 = sadd.s32 %s393, %s394
      %s396 = smul.addr %s395, 2
      %s397 = scalar_lea.vmem %s3, %s396
      %p398 = pneg %p191
      %p399 = pneg %p188
      %p400 = scmp.lt.s32.totalorder %s24, 0
      %s401 = scalar_select %p400, %s24, 0
      %p402 = scmp.lt.s32.totalorder %s25, 1
      %s403 = scalar_select %p402, %s25, 1
      %s404 = smul.addr %s403, 4
      %s405 = smul.addr %s401, 8
      %s406 = sadd.s32 %s404, %s405
      %s407 = smul.addr %s406, 2
      %s408 = scalar_lea.vmem %s4, %s407
      %p409 = pneg %p219
      %p410 = pneg %p216
      %p411 = scmp.lt.s32.totalorder %s24, 0
      %s412 = scalar_select %p411, %s24, 0
      %p413 = scmp.lt.s32.totalorder %s25, 1
      %s414 = scalar_select %p413, %s25, 1
      %s415 = smul.addr %s414, 4
      %s416 = smul.addr %s412, 8
      %s417 = sadd.s32 %s415, %s416
      %s418 = smul.addr %s417, 2
      %s419 = scalar_lea.vmem %s5, %s418
      %p420 = pneg %p247
      %p421 = pneg %p244
      %p422 = scmp.lt.s32.totalorder %s24, 0
      %s423 = scalar_select %p422, %s24, 0
      %p424 = scmp.lt.s32.totalorder %s25, 1
      %s425 = scalar_select %p424, %s25, 1
      %s426 = smul.addr %s423, 2
      %s427 = sadd.s32 %s425, %s426
      %s428 = smul.addr %s427, 2
      %s429 = scalar_lea.vmem %s6, %s428
      %p430 = pneg %p275
      %p431 = pneg %p272
      %p432 = scmp.lt.s32.totalorder %s24, 0
      %s433 = scalar_select %p432, %s24, 0
      %p434 = scmp.lt.s32.totalorder %s25, 1
      %s435 = scalar_select %p434, %s25, 1
      %s436 = smul.addr %s433, 2
      %s437 = sadd.s32 %s435, %s436
      %s438 = smul.addr %s437, 2
      %s439 = scalar_lea.vmem %s7, %s438
      %s440 = sadd.s32 %s24, %s26
      %p441 = scmp.lt.s32.totalorder %s440, 0
      %s442 = scalar_select %p441, %s440, 0
      %p443 = scmp.lt.s32.totalorder %s25, 1
      %s444 = scalar_select %p443, %s25, 1
      %p445 = scmp.lt.s32.totalorder %s442, 0
      %s446 = scalar_select %p445, %s442, 0
      %s447 = smul.addr %s444, 4
      %s448 = sadd.s32 %s446, %s447
      %s449 = smul.addr %s448, 2
      %s450 = scalar_lea.vmem %s0, %s449
      %s451 = sadd.s32 %s24, %s26
      %p452 = scmp.lt.s32.totalorder %s451, 0
      %s453 = scalar_select %p452, %s451, 0
      %s454 = sadd.s32 %s24, %s26
      %p455 = scmp.lt.s32.totalorder %s454, 0
      %s456 = scalar_select %p455, %s454, 0
      %p457 = scmp.lt.s32.totalorder %s25, 1
      %s458 = scalar_select %p457, %s25, 1
      %p459 = scmp.lt.s32.totalorder %s456, 0
      %s460 = scalar_select %p459, %s456, 0
      %s461 = sadd.s32 %s460, %s458
      %s462 = smul.addr %s461, 2
      %s463 = scalar_lea.vmem %s1, %s462
      %s464 = sadd.s32 %s24, %s26
      %p465 = scmp.lt.s32.totalorder %s464, 0
      %s466 = scalar_select %p465, %s464, 0
      %s467 = sadd.s32 %s24, %s26
      %p468 = scmp.lt.s32.totalorder %s467, 0
      %s469 = scalar_select %p468, %s467, 0
      %p470 = scmp.lt.s32.totalorder %s25, 1
      %s471 = scalar_select %p470, %s25, 1
      %p472 = scmp.lt.s32.totalorder %s469, 0
      %s473 = scalar_select %p472, %s469, 0
      %s474 = sadd.s32 %s473, %s471
      %s475 = smul.addr %s474, 2
      %s476 = scalar_lea.vmem %s2, %s475
      %s477 = sadd.s32 %s24, %s26
      %p478 = scmp.lt.s32.totalorder %s477, 0
      %s479 = scalar_select %p478, %s477, 0
      %p480 = scmp.lt.s32.totalorder %s24, 0
      %s481 = scalar_select %p480, %s24, 0
      %p482 = scmp.lt.s32.totalorder %s25, 1
      %s483 = scalar_select %p482, %s25, 1
      %s484 = smul.addr %s483, 4
      %s485 = smul.addr %s481, 8
      %s486 = sadd.s32 %s484, %s485
      %s487 = smul.addr %s486, 2
      %s488 = scalar_lea.vmem %s3, %s487
      %p489 = scmp.lt.s32.totalorder %s24, 0
      %s490 = scalar_select %p489, %s24, 0
      %p491 = scmp.lt.s32.totalorder %s25, 1
      %s492 = scalar_select %p491, %s25, 1
      %s493 = smul.addr %s492, 4
      %s494 = smul.addr %s490, 8
      %s495 = sadd.s32 %s493, %s494
      %s496 = smul.addr %s495, 2
      %s497 = scalar_lea.vmem %s4, %s496
      %p498 = scmp.lt.s32.totalorder %s24, 0
      %s499 = scalar_select %p498, %s24, 0
      %p500 = scmp.lt.s32.totalorder %s25, 1
      %s501 = scalar_select %p500, %s25, 1
      %s502 = smul.addr %s501, 4
      %s503 = smul.addr %s499, 8
      %s504 = sadd.s32 %s502, %s503
      %s505 = smul.addr %s504, 2
      %s506 = scalar_lea.vmem %s5, %s505
      %p507 = scmp.lt.s32.totalorder %s24, 0
      %s508 = scalar_select %p507, %s24, 0
      %p509 = scmp.lt.s32.totalorder %s25, 1
      %s510 = scalar_select %p509, %s25, 1
      %s511 = smul.addr %s508, 2
      %s512 = sadd.s32 %s510, %s511
      %s513 = smul.addr %s512, 2
      %s514 = scalar_lea.vmem %s6, %s513
      %p515 = scmp.lt.s32.totalorder %s24, 0
      %s516 = scalar_select %p515, %s24, 0
      %p517 = scmp.lt.s32.totalorder %s25, 1
      %s518 = scalar_select %p517, %s25, 1
      %s519 = smul.addr %s516, 2
      %s520 = sadd.s32 %s518, %s519
      %s521 = smul.addr %s520, 2
      %s522 = scalar_lea.vmem %s7, %s521
      %p523 = scmp.eq.s32.totalorder %s26, 0
      // Predicated region
      $region33: #{dc_and_ce_loss_weighted.1} parent=31 // pred_check
        %p524 = pneg %p523
      $region34: #{dc_and_ce_loss_weighted.1} parent=31 // pred_check_branch
        %526 = sbr.rel (%p524) target = $region36
      $region35: #{dc_and_ce_loss_weighted.1} parent=31 // pred_region
        %527 = vst [vmem:[%s488] sm:$0x3] 0.0
        %528 = vst [vmem:[%s488 + $0x2] sm:$0x3] 0.0
        %529 = vst [vmem:[%s488 + $0x4] sm:$0x3] 0.0
        %530 = vst [vmem:[%s488 + $0x6] sm:$0x3] 0.0
        %531 = vst [vmem:[%s497] sm:$0x3] 0.0
        %532 = vst [vmem:[%s497 + $0x2] sm:$0x3] 0.0
        %533 = vst [vmem:[%s497 + $0x4] sm:$0x3] 0.0
        %534 = vst [vmem:[%s497 + $0x6] sm:$0x3] 0.0
        %535 = vst [vmem:[%s506] sm:$0x3] 0.0
        %536 = vst [vmem:[%s506 + $0x2] sm:$0x3] 0.0
        %537 = vst [vmem:[%s506 + $0x4] sm:$0x3] 0.0
        %538 = vst [vmem:[%s506 + $0x6] sm:$0x3] 0.0
        %539 = vst [vmem:[%s514] sm:$0x3] 0.0
        %540 = vst [vmem:[%s522] sm:$0x3] 0.0
      $region36: #{dc_and_ce_loss_weighted.1} parent=31 // pred_fallthru
        _
      %v541 = vld [vmem:[%s450] sm:$0x3]
      %v542 = vld [vmem:[%s450 + $0x2] sm:$0x3]
      %v543 = vld [vmem:[%s450 + $0x4] sm:$0x3]
      %v544 = vld [vmem:[%s450 + $0x6] sm:$0x3]
      %v545 = vld [vmem:[%s463] sm:$0x3]
      %v546 = vld [vmem:[%s476] sm:$0x3]
      %vm547 = vcmask 1041408
      %v548 = vsel %vm547, %v541, -inf
      %v549 = vsel %vm547, %v542, -inf
      %v550 = vsel %vm547, %v543, -inf
      %v551 = vsel %vm547, %v544, -inf
      %v552 = vmax.f32 %v548, %v549
      %v553 = vmax.f32 %v550, %v551
      %v554 = vmax.f32 %v552, %v553
      %v555 = vsub.f32 %v541, %v554
      %v556 = vsub.f32 %v542, %v554
      %v557 = vsub.f32 %v543, %v554
      %v558 = vsub.f32 %v544, %v554
      %v559 = vmul.f32 %v555, 1.442695
      %v560 = vpow.pop %v559
      %v561 = vmul.f32 %v556, 1.442695
      %v562 = vpow.pop %v561
      %v563 = vmul.f32 %v557, 1.442695
      %v564 = vpow.pop %v563
      %v565 = vmul.f32 %v558, 1.442695
      %v566 = vpow.pop %v565
      %v567 = vsel %vm547, %v560, 0.0
      %v568 = vsel %vm547, %v562, 0.0
      %v569 = vadd.f32 %v567, %v568
      %v570 = vsel %vm547, %v564, 0.0
      %v571 = vadd.f32 %v569, %v570
      %v572 = vsel %vm547, %v566, 0.0
      %v573 = vadd.f32 %v571, %v572
      %v574 = vrcp.pop %v573
      %v575 = vmul.f32 %v573, %v574
      %v576 = vsub.f32 2.0, %v575
      %v577 = vmul.f32 %v574, %v576
      %v578 = vmul.f32 %v560, %v577
      %v579 = vmul.f32 %v562, %v577
      %v580 = vmul.f32 %v564, %v577
      %v581 = vmul.f32 %v566, %v577
      %vm582 = vcmp.eq.s32.totalorder %v545, 0
      %vm583 = vcmp.eq.s32.totalorder %v545, 1
      %vm584 = vcmp.eq.s32.totalorder %v545, 2
      %vm585 = vcmp.eq.s32.totalorder %v545, 3
      %v586 = vsel %vm582, 1, 0
      %v587 = vsel %vm583, 1, 0
      %v588 = vsel %vm584, 1, 0
      %v589 = vsel %vm585, 1, 0
      %v590 = vcvt.s32.f32 %v586
      %v591 = vcvt.s32.f32 %v587
      %v592 = vcvt.s32.f32 %v588
      %v593 = vcvt.s32.f32 %v589
      %v594 = vmul.f32 %v578, %v590
      %v595 = vmul.f32 %v579, %v591
      %v596 = vmul.f32 %v580, %v592
      %v597 = vmul.f32 %v581, %v593
      %v598 = vlog2.pop %v573
      %v599 = vmul.f32 %v598, 0.6931472
      %v600 = vmul.f32 %v555, %v590
      %v601 = vmul.f32 %v556, %v591
      %v602 = vmul.f32 %v557, %v592
      %v603 = vmul.f32 %v558, %v593
      %v604 = vsel %vm547, %v600, 0.0
      %v605 = vsel %vm547, %v601, 0.0
      %v606 = vadd.f32 %v604, %v605
      %v607 = vsel %vm547, %v602, 0.0
      %v608 = vadd.f32 %v606, %v607
      %v609 = vsel %vm547, %v603, 0.0
      %v610 = vadd.f32 %v608, %v609
      %v611 = vsub.f32 %v599, %v610
      %v612 = vmul.f32 %v611, %v546
      %v613 = vld [vmem:[%s488] sm:$0x3]
      %v614 = vld [vmem:[%s488 + $0x2] sm:$0x3]
      %v615 = vld [vmem:[%s488 + $0x4] sm:$0x3]
      %v616 = vld [vmem:[%s488 + $0x6] sm:$0x3]
      %v617 = vadd.f32 %v613, %v594
      %v618 = vadd.f32 %v614, %v595
      %v619 = vadd.f32 %v615, %v596
      %v620 = vadd.f32 %v616, %v597
      %621 = vst [vmem:[%s488] sm:$0x3] %v617
      %622 = vst [vmem:[%s488 + $0x2] sm:$0x3] %v618
      %623 = vst [vmem:[%s488 + $0x4] sm:$0x3] %v619
      %624 = vst [vmem:[%s488 + $0x6] sm:$0x3] %v620
      %v625 = vld [vmem:[%s497] sm:$0x3]
      %v626 = vld [vmem:[%s497 + $0x2] sm:$0x3]
      %v627 = vld [vmem:[%s497 + $0x4] sm:$0x3]
      %v628 = vld [vmem:[%s497 + $0x6] sm:$0x3]
      %v629 = vadd.f32 %v625, %v578
      %v630 = vadd.f32 %v626, %v579
      %v631 = vadd.f32 %v627, %v580
      %v632 = vadd.f32 %v628, %v581
      %633 = vst [vmem:[%s497] sm:$0x3] %v629
      %634 = vst [vmem:[%s497 + $0x2] sm:$0x3] %v630
      %635 = vst [vmem:[%s497 + $0x4] sm:$0x3] %v631
      %636 = vst [vmem:[%s497 + $0x6] sm:$0x3] %v632
      %v637 = vld [vmem:[%s506] sm:$0x3]
      %v638 = vld [vmem:[%s506 + $0x2] sm:$0x3]
      %v639 = vld [vmem:[%s506 + $0x4] sm:$0x3]
      %v640 = vld [vmem:[%s506 + $0x6] sm:$0x3]
      %v641 = vadd.f32 %v637, %v590
      %v642 = vadd.f32 %v638, %v591
      %v643 = vadd.f32 %v639, %v592
      %v644 = vadd.f32 %v640, %v593
      %645 = vst [vmem:[%s506] sm:$0x3] %v641
      %646 = vst [vmem:[%s506 + $0x2] sm:$0x3] %v642
      %647 = vst [vmem:[%s506 + $0x4] sm:$0x3] %v643
      %648 = vst [vmem:[%s506 + $0x6] sm:$0x3] %v644
      %v649 = vld [vmem:[%s514] sm:$0x3]
      %v650 = vadd.f32 %v649, %v612
      %651 = vst [vmem:[%s514] sm:$0x3] %v650
      %v652 = vld [vmem:[%s522] sm:$0x3]
      %v653 = vadd.f32 %v652, %v546
      %654 = vst [vmem:[%s522] sm:$0x3] %v653
      %p655 = scmp.lt.s32.totalorder %s24, 0
      %s656 = scalar_select %p655, %s24, 0
      %p657 = scmp.lt.s32.totalorder %s25, 1
      %s658 = scalar_select %p657, %s25, 1
      %s659 = smul.addr %s658, 4
      %s660 = smul.addr %s656, 8
      %s661 = sadd.s32 %s659, %s660
      %s662 = smul.addr %s661, 2
      %s663 = scalar_lea.vmem %s3, %s662
      %p664 = scmp.lt.s32.totalorder %s24, 0
      %s665 = scalar_select %p664, %s24, 0
      %p666 = scmp.lt.s32.totalorder %s25, 1
      %s667 = scalar_select %p666, %s25, 1
      %s668 = smul.addr %s667, 4
      %s669 = smul.addr %s665, 8
      %s670 = sadd.s32 %s668, %s669
      %s671 = smul.addr %s670, 2
      %s672 = scalar_lea.vmem %s4, %s671
      %p673 = scmp.lt.s32.totalorder %s24, 0
      %s674 = scalar_select %p673, %s24, 0
      %p675 = scmp.lt.s32.totalorder %s25, 1
      %s676 = scalar_select %p675, %s25, 1
      %s677 = smul.addr %s676, 4
      %s678 = smul.addr %s674, 8
      %s679 = sadd.s32 %s677, %s678
      %s680 = smul.addr %s679, 2
      %s681 = scalar_lea.vmem %s5, %s680
      %p682 = scmp.lt.s32.totalorder %s24, 0
      %s683 = scalar_select %p682, %s24, 0
      %p684 = scmp.lt.s32.totalorder %s25, 1
      %s685 = scalar_select %p684, %s25, 1
      %s686 = smul.addr %s683, 2
      %s687 = sadd.s32 %s685, %s686
      %s688 = smul.addr %s687, 2
      %s689 = scalar_lea.vmem %s6, %s688
      %p690 = scmp.lt.s32.totalorder %s24, 0
      %s691 = scalar_select %p690, %s24, 0
      %p692 = scmp.lt.s32.totalorder %s25, 1
      %s693 = scalar_select %p692, %s25, 1
      %s694 = smul.addr %s691, 2
      %s695 = sadd.s32 %s693, %s694
      %s696 = smul.addr %s695, 2
      %s697 = scalar_lea.vmem %s7, %s696
      // Predicated region
      $region37: #{dc_and_ce_loss_weighted.1} parent=31 // pred_check
        %p698 = pneg %p160
      $region38: #{dc_and_ce_loss_weighted.1} parent=31 // pred_check_branch
        %700 = sbr.rel (%p698) target = $region40
      $region39: #{dc_and_ce_loss_weighted.1} parent=31 // pred_region
        _
      $region40: #{dc_and_ce_loss_weighted.1} parent=31 // pred_fallthru
        _
      // Predicated region
      $region41: #{dc_and_ce_loss_weighted.1} parent=31 // pred_check
        %p701 = pneg %p188
      $region42: #{dc_and_ce_loss_weighted.1} parent=31 // pred_check_branch
        %703 = sbr.rel (%p701) target = $region44
      $region43: #{dc_and_ce_loss_weighted.1} parent=31 // pred_region
        _
      $region44: #{dc_and_ce_loss_weighted.1} parent=31 // pred_fallthru
        _
      // Predicated region
      $region45: #{dc_and_ce_loss_weighted.1} parent=31 // pred_check
        %p704 = pneg %p216
      $region46: #{dc_and_ce_loss_weighted.1} parent=31 // pred_check_branch
        %706 = sbr.rel (%p704) target = $region48
      $region47: #{dc_and_ce_loss_weighted.1} parent=31 // pred_region
        _
      $region48: #{dc_and_ce_loss_weighted.1} parent=31 // pred_fallthru
        _
      // Predicated region
      $region49: #{dc_and_ce_loss_weighted.1} parent=31 // pred_check
        %p707 = pneg %p244
      $region50: #{dc_and_ce_loss_weighted.1} parent=31 // pred_check_branch
        %709 = sbr.rel (%p707) target = $region52
      $region51: #{dc_and_ce_loss_weighted.1} parent=31 // pred_region
        _
      $region52: #{dc_and_ce_loss_weighted.1} parent=31 // pred_fallthru
        _
      // Predicated region
      $region53: #{dc_and_ce_loss_weighted.1} parent=31 // pred_check
        %p710 = pneg %p272
      $region54: #{dc_and_ce_loss_weighted.1} parent=31 // pred_check_branch
        %712 = sbr.rel (%p710) target = $region56
      $region55: #{dc_and_ce_loss_weighted.1} parent=31 // pred_region
        _
      $region56: #{dc_and_ce_loss_weighted.1} parent=31 // pred_fallthru
        _
    $region32: #{dc_and_ce_loss_weighted.1} parent=5 // pred_fallthru
      _
    %p713 = scmp.le.s32.totalorder 2, %s14
    // Predicated region
    $region57: #{dc_and_ce_loss_weighted.1} parent=5 // pred_check
      %p714 = pneg %p713
    $region58: #{dc_and_ce_loss_weighted.1} parent=5 // pred_check_branch
      %716 = sbr.rel (%p714) target = $region60
    $region59: #{dc_and_ce_loss_weighted.1} parent=5 // pred_region
      %s717 = ssub.s32 %s14, 2
      // Predicated region
      $region61: #{dc_and_ce_loss_weighted.1} parent=59 // pred_check
        %p718 = pneg %p166
      $region62: #{dc_and_ce_loss_weighted.1} parent=59 // pred_check_branch
        %720 = sbr.rel (%p718) target = $region64
      $region63: #{dc_and_ce_loss_weighted.1} parent=59 // pred_region
        %p721 = scmp.lt.s32.totalorder %s27, 0
        %s722 = scalar_select %p721, %s27, 0
        %p723 = scmp.lt.s32.totalorder %s28, 1
        %s724 = scalar_select %p723, %s28, 1
        %s725 = smul.addr %s724, 4
        %s726 = smul.addr %s722, 8
        %s727 = sadd.s32 %s725, %s726
        %s728 = smul.addr %s727, 2
        %s729 = scalar_lea.vmem %s3, %s728
      $region64: #{dc_and_ce_loss_weighted.1} parent=59 // pred_fallthru
        _
      // Predicated region
      $region65: #{dc_and_ce_loss_weighted.1} parent=59 // pred_check
        %p730 = pneg %p194
      $region66: #{dc_and_ce_loss_weighted.1} parent=59 // pred_check_branch
        %732 = sbr.rel (%p730) target = $region68
      $region67: #{dc_and_ce_loss_weighted.1} parent=59 // pred_region
        %p733 = scmp.lt.s32.totalorder %s27, 0
        %s734 = scalar_select %p733, %s27, 0
        %p735 = scmp.lt.s32.totalorder %s28, 1
        %s736 = scalar_select %p735, %s28, 1
        %s737 = smul.addr %s736, 4
        %s738 = smul.addr %s734, 8
        %s739 = sadd.s32 %s737, %s738
        %s740 = smul.addr %s739, 2
        %s741 = scalar_lea.vmem %s4, %s740
      $region68: #{dc_and_ce_loss_weighted.1} parent=59 // pred_fallthru
        _
      // Predicated region
      $region69: #{dc_and_ce_loss_weighted.1} parent=59 // pred_check
        %p742 = pneg %p222
      $region70: #{dc_and_ce_loss_weighted.1} parent=59 // pred_check_branch
        %744 = sbr.rel (%p742) target = $region72
      $region71: #{dc_and_ce_loss_weighted.1} parent=59 // pred_region
        %p745 = scmp.lt.s32.totalorder %s27, 0
        %s746 = scalar_select %p745, %s27, 0
        %p747 = scmp.lt.s32.totalorder %s28, 1
        %s748 = scalar_select %p747, %s28, 1
        %s749 = smul.addr %s748, 4
        %s750 = smul.addr %s746, 8
        %s751 = sadd.s32 %s749, %s750
        %s752 = smul.addr %s751, 2
        %s753 = scalar_lea.vmem %s5, %s752
      $region72: #{dc_and_ce_loss_weighted.1} parent=59 // pred_fallthru
        _
      // Predicated region
      $region73: #{dc_and_ce_loss_weighted.1} parent=59 // pred_check
        %p754 = pneg %p250
      $region74: #{dc_and_ce_loss_weighted.1} parent=59 // pred_check_branch
        %756 = sbr.rel (%p754) target = $region76
      $region75: #{dc_and_ce_loss_weighted.1} parent=59 // pred_region
        %p757 = scmp.lt.s32.totalorder %s27, 0
        %s758 = scalar_select %p757, %s27, 0
        %p759 = scmp.lt.s32.totalorder %s28, 1
        %s760 = scalar_select %p759, %s28, 1
        %s761 = smul.addr %s758, 2
        %s762 = sadd.s32 %s760, %s761
        %s763 = smul.addr %s762, 2
        %s764 = scalar_lea.vmem %s6, %s763
      $region76: #{dc_and_ce_loss_weighted.1} parent=59 // pred_fallthru
        _
      // Predicated region
      $region77: #{dc_and_ce_loss_weighted.1} parent=59 // pred_check
        %p765 = pneg %p278
      $region78: #{dc_and_ce_loss_weighted.1} parent=59 // pred_check_branch
        %767 = sbr.rel (%p765) target = $region80
      $region79: #{dc_and_ce_loss_weighted.1} parent=59 // pred_region
        %p768 = scmp.lt.s32.totalorder %s27, 0
        %s769 = scalar_select %p768, %s27, 0
        %p770 = scmp.lt.s32.totalorder %s28, 1
        %s771 = scalar_select %p770, %s28, 1
        %s772 = smul.addr %s769, 2
        %s773 = sadd.s32 %s771, %s772
        %s774 = smul.addr %s773, 2
        %s775 = scalar_lea.vmem %s7, %s774
      $region80: #{dc_and_ce_loss_weighted.1} parent=59 // pred_fallthru
        _
    $region60: #{dc_and_ce_loss_weighted.1} parent=5 // pred_fallthru
      _
  $region6: #{dc_and_ce_loss_weighted.1} parent=0 // loop_footer
    %s18 = sadd.s32 1, %s14
  $region7: #{dc_and_ce_loss_weighted.1} parent=0 // loop_footer_branch
    %13 = sbr.rel target = $region3
  $region8: #{dc_and_ce_loss_weighted.1} parent=0 // loop_exit
    _

</llo_original>
